<compile_context>
chip_gen: v7x
topology: tpu7x:2x2x1
jax: 0.10.0
libtpu: 0.0.40
codegen_flags: <defaults>
</compile_context>

<pallas_src>
import functools

import jax
import jax.numpy as jnp
from jax.experimental import pallas as pl
from jax.experimental.pallas import tpu as pltpu


NEG_FILL = -10000.0


def _round_up(x, m):
    return ((x + m - 1) // m) * m


def _pick_bt(B, L, target_rows=1024):
    """Batch rows per grid step.

    * Bt*L ~ target_rows so each step feeds the MXU a real M dimension and the
      ~600-cycle per-step overhead is amortized.
    * Bt is ALWAYS a multiple of 8 (sublane alignment of the (Bt, Hp) output
      block, independent of whether the block equals the full array).
    * When the (padded) batch is large enough, cap Bt so the grid has >= 2
      blocks -- on v7x the "parallel" batch axis then feeds both TensorCores.
    """
    bt = max(8, (max(1, target_rows // max(L, 1)) // 8) * 8)
    b8 = _round_up(B, 8)
    bt = min(bt, b8)
    if bt >= b8 and b8 >= 16:          # keep grid >= 2 when batch permits (v7x)
        bt = max(8, ((b8 // 2) // 8) * 8)
    return bt


def _make_kernel(Bt, L):
    def kernel(x_ref, lens_ref, w_ref, b_ref, pooled_ref):
        """Fused conv(3, pad=1) + bias + ReLU + length-mask + max-pool over L.

        x_ref:      (Bt*L, 3E)  bf16 im2col'd embeddings [x[l-1] | x[l] | x[l+1]]
        lens_ref:   (Bt, 1)     int32 sequence lengths
        w_ref:      (3E, Hp)    bf16 flattened conv weight (H zero-padded to Hp)
        b_ref:      (1, Hp)     f32 conv bias
        pooled_ref: (Bt, Hp)    f32 masked max-pooled features (lane-dense store)
        """
        Hp = w_ref.shape[-1]

        # Conv1d(kernel=3, padding=1) == ONE im2col matmul, f32 accumulation.
        y = jnp.dot(x_ref[...], w_ref[...], preferred_element_type=jnp.float32)
        y = jnp.maximum(y + b_ref[...], 0.0)                    # bias + ReLU
        y = y.reshape(Bt, L, Hp)

        # Vectorized masked_fill(-1e4) + max over the sequence axis:
        # one broadcast compare, one select, one cross-sublane reduce.
        pos = jax.lax.broadcasted_iota(jnp.int32, (Bt, L, Hp), 1)
        valid = pos < lens_ref[...][:, :, None]                 # (Bt,1,1) broadcast
        pooled_ref[...] = jnp.max(jnp.where(valid, y, NEG_FILL), axis=1)

    return kernel


@functools.partial(jax.jit, static_argnames=("target_rows",))
def cnn_forward(x_emb, lengths, wc, bc, wo, bo, *, target_rows=1024):
    """conv -> ReLU -> masked_fill -> max-pool (Pallas) -> Linear (XLA).

    x_emb: (B, L, E) bf16 embedded tokens (cast folded into the gather).
    wc:    (3, E, H) f32 conv taps, tap k multiplies x[l - 1 + k].
    """
    B, L, E = x_emb.shape
    H = wc.shape[-1]

    Bt = _pick_bt(B, L, target_rows)
    Bp = pl.cdiv(B, Bt) * Bt
    Hp = _round_up(H, 128)

    # im2col in the wrapper: pad the sequence by one row each side (conv
    # padding) and batch up to Bp, concatenate the three taps along the feature
    # axis, and flatten to (Bp*L, 3E) so the kernel does a single K=3E matmul
    # with no in-kernel slicing/relayouts.  Padded batch rows have length 0.
    xp = jnp.pad(x_emb, ((0, Bp - B), (1, 1), (0, 0)))                  # (Bp, L+2, E)
    x_i2c = jnp.concatenate(
        [xp[:, 0:L], xp[:, 1:L + 1], xp[:, 2:L + 2]], axis=-1
    ).reshape(Bp * L, 3 * E)                                            # (Bp*L, 3E) bf16
    lens_p = jnp.pad(lengths.astype(jnp.int32), (0, Bp - B)).reshape(Bp, 1)
    w_p = jnp.pad(wc.reshape(3 * E, H), ((0, 0), (0, Hp - H))).astype(jnp.bfloat16)
    b_p = jnp.pad(bc.reshape(1, H).astype(jnp.float32), ((0, 0), (0, Hp - H)))

    pooled = pl.pallas_call(
        _make_kernel(Bt, L),
        out_shape=jax.ShapeDtypeStruct((Bp, Hp), jnp.float32),
        grid=(Bp // Bt,),
        in_specs=[
            pl.BlockSpec((Bt * L, 3 * E), lambda b: (b, 0)),   # im2col'd x (bf16)
            pl.BlockSpec((Bt, 1), lambda b: (b, 0)),           # lengths (int32 VMEM)
            pl.BlockSpec((3 * E, Hp), lambda b: (0, 0)),       # conv weight (shared)
            pl.BlockSpec((1, Hp), lambda b: (0, 0)),           # conv bias (shared)
        ],
        out_specs=pl.BlockSpec((Bt, Hp), lambda b: (b, 0)),    # pooled (lane-dense)
        compiler_params=pltpu.CompilerParams(
            dimension_semantics=("parallel",)),                # batch axis -> both TCs on v7x
    )(x_i2c, lens_p, w_p, b_p)

    # Tiny (B, H) x (H, C=4) projection: lane-sparse output, keep it in XLA.
    pooled = pooled[:B, :H]
    return jnp.dot(pooled, wo, precision=jax.lax.Precision.HIGHEST) + bo


def init_params(key, v_size, e_size, h_size, c_size):
    k1, k2, k3 = jax.random.split(key, 3)
    # nn.init.normal_(embed.weight, 0, 0.1)
    embed = 0.1 * jax.random.normal(k1, (v_size, e_size), jnp.float32)
    # kaiming_normal_ for the conv (fan_in = 3 * e_size for the seq-conv view)
    wc = jax.random.normal(k2, (3, e_size, h_size), jnp.float32) * jnp.sqrt(2.0 / (3 * e_size))
    bc = jnp.zeros((1, h_size), jnp.float32)
    # kaiming_normal_ for the output Linear (fan_in = h_size); stored transposed (H, C)
    wo = jax.random.normal(k3, (h_size, c_size), jnp.float32) * jnp.sqrt(2.0 / h_size)
    bo = jnp.zeros((1, c_size), jnp.float32)
    return embed, wc, bc, wo, bo


if __name__ == "__main__":
    v_size, e_size, h_size, c_size = 50, 32, 32, 4
    B, L = 2, 8

    key = jax.random.PRNGKey(0)
    kp, ki = jax.random.split(key)
    embed, wc, bc, wo, bo = init_params(kp, v_size, e_size, h_size, c_size)

    inputs = jax.random.randint(ki, (B, L), 0, v_size)                     # token ids
    lengths = jnp.array([L, 5], dtype=jnp.int32)

    # Embedding lookup in plain JAX with the bf16 cast folded into the gather;
    # dropout is identity at inference.
    x_emb = jnp.take(embed.astype(jnp.bfloat16), inputs, axis=0)           # (B, L, E) bf16

    out = cnn_forward(x_emb, lengths, wc, bc, wo, bo)
    jax.block_until_ready(out)

    # Pure-JAX reference, using the same bf16-rounded MXU inputs with f32 accumulation.
    # TODO(synk): bf16 MXU inputs deviate from the f32 PyTorch module; validate
    #             against the true f32 model with an appropriate tolerance before shipping.
    hi = jax.lax.Precision.HIGHEST
    xb = x_emb.astype(jnp.float32)
    wcb = wc.astype(jnp.bfloat16).astype(jnp.float32)
    xpad = jnp.pad(xb, ((0, 0), (1, 1), (0, 0)))
    ref = (jnp.einsum('ble,eh->blh', xpad[:, :-2], wcb[0], precision=hi)
           + jnp.einsum('ble,eh->blh', xpad[:, 1:-1], wcb[1], precision=hi)
           + jnp.einsum('ble,eh->blh', xpad[:, 2:], wcb[2], precision=hi) + bc)
    ref = jnp.maximum(ref, 0.0)
    mask = jnp.arange(L)[None, :] < lengths[:, None]                        # (B, L)
    ref = jnp.where(mask[:, :, None], ref, NEG_FILL)
    ref = jnp.max(ref, axis=1)                                              # (B, H)
    ref = jnp.dot(ref, wo, precision=hi) + bo                               # (B, C)

    assert out.shape == (B, c_size)
    assert jnp.allclose(out, ref, atol=1e-3, rtol=1e-3), (out, ref)
    print("KERNEL_OK")
</pallas_src>

<mosaic_0001>
module attributes {stable_mosaic.version = 11 : i64} {
  func.func @kernel(%arg0: i32, %arg1: memref<64x96xbf16, #tpu.memory_space<vmem>>, %arg2: memref<8x1xi32, #tpu.memory_space<vmem>>, %arg3: memref<96x128xbf16, #tpu.memory_space<vmem>>, %arg4: memref<1x128xf32, #tpu.memory_space<vmem>>, %arg5: memref<8x128xf32, #tpu.memory_space<vmem>>) attributes {dimension_semantics = [#tpu.dimension_semantics<parallel>], iteration_bounds = array<i64: 1>, scalar_prefetch = 0 : i64, scratch_operands = 0 : i64, tpu.core_type = #tpu.core_type<tc>, window_params = [{transform_indices = @transform_0, window_bounds = array<i64: 64, 96>}, {transform_indices = @transform_1, window_bounds = array<i64: 8, 1>}, {pipeline_mode = #tpu.pipeline_mode<synchronous>, transform_indices = @transform_2, window_bounds = array<i64: 96, 128>}, {pipeline_mode = #tpu.pipeline_mode<synchronous>, transform_indices = @transform_3, window_bounds = array<i64: 1, 128>}, {transform_indices = @transform_4, window_bounds = array<i64: 8, 128>}]} {
    %c0 = arith.constant 0 : index
    %c0_0 = arith.constant 0 : index
    %0 = vector.load %arg1[%c0, %c0_0] : memref<64x96xbf16, #tpu.memory_space<vmem>>, vector<64x96xbf16>
    %c0_1 = arith.constant 0 : index
    %c0_2 = arith.constant 0 : index
    %1 = vector.load %arg3[%c0_1, %c0_2] : memref<96x128xbf16, #tpu.memory_space<vmem>>, vector<96x128xbf16>
    %cst = arith.constant dense<0.000000e+00> : vector<64x128xf32>
    %2 = tpu.matmul %0, %1, %cst {dimension_numbers = #tpu.dot_dimension_numbers<[1], [0], [0], [1], [0, 0, 1, 1], [], []>} : vector<64x96xbf16>, vector<96x128xbf16>, vector<64x128xf32> -> vector<64x128xf32>
    %c0_3 = arith.constant 0 : index
    %c0_4 = arith.constant 0 : index
    %3 = vector.load %arg4[%c0_3, %c0_4] : memref<1x128xf32, #tpu.memory_space<vmem>>, vector<1x128xf32>
    %4 = vector.broadcast %3 : vector<1x128xf32> to vector<64x128xf32>
    %5 = arith.addf %2, %4 : vector<64x128xf32>
    %cst_5 = arith.constant 0.000000e+00 : f32
    %6 = vector.broadcast %cst_5 : f32 to vector<64x128xf32>
    %7 = arith.maximumf %5, %6 : vector<64x128xf32>
    %8 = vector.shape_cast %7 : vector<64x128xf32> to vector<8x8x128xf32>
    %9 = tpu.iota {dimensions = array<i32: 1>} : vector<8x8x128xi32>
    %c0_6 = arith.constant 0 : index
    %c0_7 = arith.constant 0 : index
    %10 = vector.load %arg2[%c0_6, %c0_7] : memref<8x1xi32, #tpu.memory_space<vmem>>, vector<8x1xi32>
    %11 = vector.shape_cast %10 : vector<8x1xi32> to vector<8x1x1xi32>
    %12 = vector.broadcast %11 : vector<8x1x1xi32> to vector<8x8x128xi32>
    %13 = arith.cmpi slt, %9, %12 : vector<8x8x128xi32>
    %cst_8 = arith.constant -1.000000e+04 : f32
    %14 = vector.broadcast %cst_8 : f32 to vector<8x8x128xf32>
    %15 = arith.select %13, %8, %14 : vector<8x8x128xi1>, vector<8x8x128xf32>
    %cst_9 = arith.constant dense<0xFF800000> : vector<8x128xf32>
    %16 = vector.multi_reduction <maximumf>, %15, %cst_9 [1] : vector<8x8x128xf32> to vector<8x128xf32>
    %c0_10 = arith.constant 0 : index
    %c0_11 = arith.constant 0 : index
    %17 = vector.load %arg5[%c0_10, %c0_11] : memref<8x128xf32, #tpu.memory_space<vmem>>, vector<8x128xf32>
    tpu.vector_store %arg5[%c0_10, %c0_11], %16 {strides = array<i32>} : memref<8x128xf32, #tpu.memory_space<vmem>>, vector<8x128xf32>,
    return
  }
  func.func @transform_0(%arg0: i32) -> (i32, i32) {
    %c0_i32 = arith.constant 0 : i32
    %c0_i32_0 = arith.constant 0 : i32
    return %arg0, %c0_i32 : i32, i32
  }
  func.func @transform_1(%arg0: i32) -> (i32, i32) {
    %c0_i32 = arith.constant 0 : i32
    %c0_i32_0 = arith.constant 0 : i32
    return %arg0, %c0_i32 : i32, i32
  }
  func.func @transform_2(%arg0: i32) -> (i32, i32) {
    %c0_i32 = arith.constant 0 : i32
    %c0_i32_0 = arith.constant 0 : i32
    %c0_i32_1 = arith.constant 0 : i32
    return %c0_i32, %c0_i32_0 : i32, i32
  }
  func.func @transform_3(%arg0: i32) -> (i32, i32) {
    %c0_i32 = arith.constant 0 : i32
    %c0_i32_0 = arith.constant 0 : i32
    %c0_i32_1 = arith.constant 0 : i32
    return %c0_i32, %c0_i32_0 : i32, i32
  }
  func.func @transform_4(%arg0: i32) -> (i32, i32) {
    %c0_i32 = arith.constant 0 : i32
    %c0_i32_0 = arith.constant 0 : i32
    return %arg0, %c0_i32 : i32, i32
  }
}

</mosaic_0001>

<llo_original>
// kernel: cnn_forward.1
$region0: #{cnn_forward.1}
  #allocation0 [shape = 'u32[]', space=smem, size = 0x4, offset = 0x4, fixed_abs, tag = 'smem constant byte address 0x4 - core index']
  #allocation1 [shape = 'u32[144,128]{1,0:T(1,128)}', space=vmem, size = 0x12000, scoped, tag = 'internal scratch']
  %s0 = inlined_call_operand.vmem [shape: bf16[64,96], index: 0, kind: input, shape index: {}]
  %s1 = inlined_call_operand.vmem [shape: s32[8,1], index: 1, kind: input, shape index: {}]
  %s2 = inlined_call_operand.vmem [shape: bf16[96,128], index: 2, kind: input, shape index: {}]
  %s3 = inlined_call_operand.vmem [shape: f32[1,128], index: 3, kind: input, shape index: {}]
  %s4 = inlined_call_operand.vmem [shape: f32[8,128], index: 4, kind: output, shape index: {}]
  %s5 = sld [smem:[#allocation0]]
  $region26: #{cnn_forward.1} parent=0
    _
  %s7 = ssub.s32 1, %s5
  %s8 = scalar_select 0, %s7, %s5
  // Predicated region
  $region2: #{cnn_forward.1} parent=0 // pred_check
    _
  $region3: #{cnn_forward.1} parent=0 // pred_check_branch
    %10 = sbr.rel (0) target = $region5
  $region4: #{cnn_forward.1} parent=0 // pred_region
    _
  $region5: #{cnn_forward.1} parent=0 // pred_fallthru
    _
  // Predicated region
  $region6: #{cnn_forward.1} parent=0 // pred_check
    _
  $region7: #{cnn_forward.1} parent=0 // pred_check_branch
    %12 = sbr.rel (0) target = $region9
  $region8: #{cnn_forward.1} parent=0 // pred_region
    _
  $region9: #{cnn_forward.1} parent=0 // pred_fallthru
    _
  // Predicated region
  $region10: #{cnn_forward.1} parent=0 // pred_check
    _
  $region11: #{cnn_forward.1} parent=0 // pred_check_branch
    %14 = sbr.rel (0) target = $region13
  $region12: #{cnn_forward.1} parent=0 // pred_region
    _
  $region13: #{cnn_forward.1} parent=0 // pred_fallthru
    _
  // Predicated region
  $region14: #{cnn_forward.1} parent=0 // pred_check
    _
  $region15: #{cnn_forward.1} parent=0 // pred_check_branch
    %16 = sbr.rel (0) target = $region17
  $region16: #{cnn_forward.1} parent=0 // pred_region
    _
  $region17: #{cnn_forward.1} parent=0 // pred_fallthru
    _
  %v18 = vld [vmem:[%s0] sm:$0xf]
  %v19 = vld [vmem:[%s0 + $0x4] sm:$0xf]
  %v20 = vld [vmem:[%s0 + $0x8] sm:$0xf]
  %v21 = vld [vmem:[%s0 + $0xc] sm:$0xf]
  %v22 = vld [vmem:[%s0 + $0x10] sm:$0xf]
  %v23 = vld [vmem:[%s0 + $0x14] sm:$0xf]
  %v24 = vld [vmem:[%s0 + $0x18] sm:$0xf]
  %v25 = vld [vmem:[%s0 + $0x1c] sm:$0xf]
  %v26 = vld [vmem:[%s2] sm:$0xf]
  %v27 = vld [vmem:[%s2 + $0x4] sm:$0xf]
  %v28 = vld [vmem:[%s2 + $0x8] sm:$0xf]
  %v29 = vld [vmem:[%s2 + $0xc] sm:$0xf]
  %v30 = vld [vmem:[%s2 + $0x10] sm:$0xf]
  %v31 = vld [vmem:[%s2 + $0x14] sm:$0xf]
  %v32 = vld [vmem:[%s2 + $0x18] sm:$0xf]
  %v33 = vld [vmem:[%s2 + $0x1c] sm:$0xf]
  %v34 = vld [vmem:[%s2 + $0x20] sm:$0xf]
  %v35 = vld [vmem:[%s2 + $0x24] sm:$0xf]
  %v36 = vld [vmem:[%s2 + $0x28] sm:$0xf]
  %v37 = vld [vmem:[%s2 + $0x2c] sm:$0xf]
  %v38 = vld [vmem:[%s3] sm:$0x1]
  %v40 = vlaneseq
  %v41 = vshrl.u32 %v40, 7
  %v42 = vsub.s32 0, %v41
  %v43 = vrot.slane %v38, %v42
  %v53 = vunpack.c.l.b16 %v18
  %v54 = vunpack.c.l.b16 %v19
  %v55 = vunpack.c.l.b16 %v20
  %v56 = vunpack.c.l.b16 %v21
  %v57 = vunpack.c.l.b16 %v22
  %v58 = vunpack.c.l.b16 %v23
  %v59 = vunpack.c.l.b16 %v24
  %v60 = vunpack.c.l.b16 %v25
  %v61 = vpack.c.b16 %v54, %v53
  %v62 = vpack.c.b16 %v56, %v55
  %v63 = vpack.c.b16 %v58, %v57
  %v64 = vpack.c.b16 %v60, %v59
  %v77 = vunpack.c.l.b16 %v26
  %v78 = vunpack.c.l.b16 %v27
  %v79 = vunpack.c.l.b16 %v28
  %v80 = vunpack.c.l.b16 %v29
  %v81 = vunpack.c.l.b16 %v30
  %v82 = vunpack.c.l.b16 %v31
  %v83 = vunpack.c.l.b16 %v32
  %v84 = vunpack.c.l.b16 %v33
  %v85 = vunpack.c.l.b16 %v34
  %v86 = vunpack.c.l.b16 %v35
  %v87 = vunpack.c.l.b16 %v36
  %v88 = vunpack.c.l.b16 %v37
  %v89 = vpack.c.b16 %v78, %v77
  %v90 = vpack.c.b16 %v80, %v79
  %v91 = vpack.c.b16 %v82, %v81
  %v92 = vpack.c.b16 %v84, %v83
  %v93 = vpack.c.b16 %v86, %v85
  %v94 = vpack.c.b16 %v88, %v87
  %vm101 = vcmask 785408
  %v103 = vsel %vm101, %v61, 0
  %v106 = vsel %vm101, %v62, 0
  %v109 = vsel %vm101, %v63, 0
  %v112 = vsel %vm101, %v64, 0
  %114 = vmatprep.subr.bf16.mxu0 0
  %115 = vmatpush1.bf16.msra.mxu0 %v89
  %116 = vmatprep.subr.bf16.mxu0 0
  %117 = vmatpush1.bf16.msra.mxu0 %v90
  %118 = vmatprep.subr.bf16.mxu0 0
  %119 = vmatpush1.bf16.msra.mxu0 %v91
  %120 = vmatprep.subr.bf16.mxu0 0
  %121 = vmatpush1.bf16.msra.mxu0 %v92
  %122 = vmatprep.subr.bf16.mxu0 0
  %123 = vmatpush1.bf16.msra.mxu0 %v93
  %124 = vmatprep.subr.bf16.mxu0 0
  %125 = vmatpush1.bf16.msra.mxu0 %v94
  %126 = vmatprep.subr.bf16.mxu0 0
  %127 = vmatpush1.bf16.msra.mxu0 0
  %128 = vmatprep.subr.bf16.mxu0 0
  %129 = vmatpush1.bf16.msra.mxu0 0
  %130 = vmatprep.subr.bf16.mxu0 0
  %131 = vmatpush1.bf16.msra.mxu0 0
  %132 = vmatprep.subr.bf16.mxu0 0
  %133 = vmatpush1.bf16.msra.mxu0 0
  %134 = vmatprep.subr.bf16.mxu0 0
  %135 = vmatpush1.bf16.msra.mxu0 0
  %136 = vmatprep.subr.bf16.mxu0 0
  %137 = vmatpush1.bf16.msra.mxu0 0
  %138 = vmatprep.subr.bf16.mxu0 0
  %139 = vmatpush1.bf16.msra.mxu0 0
  %140 = vmatprep.subr.bf16.mxu0 0
  %141 = vmatpush1.bf16.msra.mxu0 0
  %142 = vmatprep.subr.bf16.mxu0 0
  %143 = vmatpush1.bf16.msra.mxu0 0
  %144 = vmatprep.subr.bf16.mxu0 0
  %145 = vmatpush1.bf16.msra.mxu0 0
  %146 = vmatprep.mubr.bf16.mxu0 0
  %147 = vmatmul.mubr.bf16.gmra.mrb[0].mxu0 %v103
  %v148 = vpop.f32.mrb[0].mxu0
  %v149 = vadd.f32 %v43, %v148
  %v150 = vpop.f32.mrb[0].mxu0
  %v151 = vpop.f32.mrb[0].mxu0
  %v152 = vadd.f32 %v43, %v151
  %v153 = vpop.f32.mrb[0].mxu0
  %154 = vmatprep.mubr.bf16.mxu0 0
  %155 = vmatmul.mubr.bf16.gmra.mrb[0].mxu0 %v106
  %v156 = vpop.f32.mrb[0].mxu0
  %v157 = vadd.f32 %v43, %v156
  %v158 = vpop.f32.mrb[0].mxu0
  %v159 = vpop.f32.mrb[0].mxu0
  %v160 = vadd.f32 %v43, %v159
  %v161 = vpop.f32.mrb[0].mxu0
  %162 = vmatprep.mubr.bf16.mxu0 0
  %163 = vmatmul.mubr.bf16.gmra.mrb[0].mxu0 %v109
  %v164 = vpop.f32.mrb[0].mxu0
  %v165 = vadd.f32 %v43, %v164
  %v166 = vpop.f32.mrb[0].mxu0
  %v167 = vpop.f32.mrb[0].mxu0
  %v168 = vadd.f32 %v43, %v167
  %v169 = vpop.f32.mrb[0].mxu0
  %170 = vmatprep.mubr.bf16.mxu0 0
  %171 = vmatmul.mubr.bf16.gmra.mrb[0].mxu0 %v112
  %v172 = vpop.f32.mrb[0].mxu0
  %v173 = vadd.f32 %v43, %v172
  %v174 = vpop.f32.mrb[0].mxu0
  %v175 = vpop.f32.mrb[0].mxu0
  %v176 = vadd.f32 %v43, %v175
  %v177 = vpop.f32.mrb[0].mxu0
  %178 = vdwg.mxu0
  %v179 = vmax.f32 %v149, 0.0
  %v180 = vmax.f32 %v152, 0.0
  %v181 = vmax.f32 %v157, 0.0
  %v182 = vmax.f32 %v160, 0.0
  %v183 = vmax.f32 %v165, 0.0
  %v184 = vmax.f32 %v168, 0.0
  %v185 = vmax.f32 %v173, 0.0
  %v186 = vmax.f32 %v176, 0.0
  %v187 = vlaneseq
  %v188 = vshrl.u32 %v187, 7
  %v189 = vld [vmem:[%s1] sm:$0xff]
  %v190 = vcombine.high %v189, %v189
  %v192 = vunpack.c.l.s4 1966171168
  %v193 = vunpack.c.0.s8 %v192
  %v194 = vlaneseq
  %v195 = vshrl.u32 %v194, 7
  %v196 = vsub.s32 %v193, %v195
  %v197 = vrot.slane %v189, %v196
  %v199 = vunpack.c.l.s4 1966171168
  %v200 = vunpack.c.0.s8 %v199
  %v201 = vlaneseq
  %v202 = vshrl.u32 %v201, 7
  %v203 = vsub.s32 %v200, %v202
  %v204 = vrot.slane %v190, %v203
  %v205 = vcombine.high %v197, %v197
  %v206 = vcombine.high %v204, %v204
  %v208 = vunpack.c.l.s4 1966171168
  %v209 = vunpack.c.0.s8 %v208
  %v210 = vlaneseq
  %v211 = vshrl.u32 %v210, 7
  %v212 = vsub.s32 %v209, %v211
  %v213 = vrot.slane %v197, %v212
  %v215 = vunpack.c.l.s4 1966171168
  %v216 = vunpack.c.0.s8 %v215
  %v217 = vlaneseq
  %v218 = vshrl.u32 %v217, 7
  %v219 = vsub.s32 %v216, %v218
  %v220 = vrot.slane %v204, %v219
  %v222 = vunpack.c.l.s4 1966171168
  %v223 = vunpack.c.0.s8 %v222
  %v224 = vlaneseq
  %v225 = vshrl.u32 %v224, 7
  %v226 = vsub.s32 %v223, %v225
  %v227 = vrot.slane %v205, %v226
  %v229 = vunpack.c.l.s4 1966171168
  %v230 = vunpack.c.0.s8 %v229
  %v231 = vlaneseq
  %v232 = vshrl.u32 %v231, 7
  %v233 = vsub.s32 %v230, %v232
  %v234 = vrot.slane %v206, %v233
  %v235 = vcombine.high %v213, %v213
  %v236 = vcombine.high %v220, %v220
  %v237 = vcombine.high %v227, %v227
  %v238 = vcombine.high %v234, %v234
  %v239 = vlaneseq
  %v240 = vshrl.u32 %v239, 7
  %v241 = vsub.s32 0, %v240
  %v242 = vrot.slane %v213, %v241
  %v243 = vlaneseq
  %v244 = vshrl.u32 %v243, 7
  %v245 = vsub.s32 0, %v244
  %v246 = vrot.slane %v227, %v245
  %v247 = vlaneseq
  %v248 = vshrl.u32 %v247, 7
  %v249 = vsub.s32 0, %v248
  %v250 = vrot.slane %v235, %v249
  %v251 = vlaneseq
  %v252 = vshrl.u32 %v251, 7
  %v253 = vsub.s32 0, %v252
  %v254 = vrot.slane %v237, %v253
  %v255 = vlaneseq
  %v256 = vshrl.u32 %v255, 7
  %v257 = vsub.s32 0, %v256
  %v258 = vrot.slane %v220, %v257
  %v259 = vlaneseq
  %v260 = vshrl.u32 %v259, 7
  %v261 = vsub.s32 0, %v260
  %v262 = vrot.slane %v234, %v261
  %v263 = vlaneseq
  %v264 = vshrl.u32 %v263, 7
  %v265 = vsub.s32 0, %v264
  %v266 = vrot.slane %v236, %v265
  %v267 = vlaneseq
  %v268 = vshrl.u32 %v267, 7
  %v269 = vsub.s32 0, %v268
  %v270 = vrot.slane %v238, %v269
  %271 = vset.pattern.permute.xlu0 0
  %272 = vperm.xlu0 %271, %v242
  %v273 = vpop.permute.xlu0 %272
  %274 = vset.pattern.permute.xlu0 0
  %275 = vperm.xlu0 %274, %v246
  %v276 = vpop.permute.xlu0 %275
  %277 = vset.pattern.permute.xlu0 0
  %278 = vperm.xlu0 %277, %v250
  %v279 = vpop.permute.xlu0 %278
  %280 = vset.pattern.permute.xlu0 0
  %281 = vperm.xlu0 %280, %v254
  %v282 = vpop.permute.xlu0 %281
  %283 = vset.pattern.permute.xlu0 0
  %284 = vperm.xlu0 %283, %v258
  %v285 = vpop.permute.xlu0 %284
  %286 = vset.pattern.permute.xlu0 0
  %287 = vperm.xlu0 %286, %v262
  %v288 = vpop.permute.xlu0 %287
  %289 = vset.pattern.permute.xlu0 0
  %290 = vperm.xlu0 %289, %v266
  %v291 = vpop.permute.xlu0 %290
  %292 = vset.pattern.permute.xlu0 0
  %293 = vperm.xlu0 %292, %v270
  %v294 = vpop.permute.xlu0 %293
  %vm295 = vcmp.lt.s32.totalorder %v188, %v273
  %vm296 = vcmp.lt.s32.totalorder %v188, %v276
  %vm297 = vcmp.lt.s32.totalorder %v188, %v279
  %vm298 = vcmp.lt.s32.totalorder %v188, %v282
  %vm299 = vcmp.lt.s32.totalorder %v188, %v285
  %vm300 = vcmp.lt.s32.totalorder %v188, %v288
  %vm301 = vcmp.lt.s32.totalorder %v188, %v291
  %vm302 = vcmp.lt.s32.totalorder %v188, %v294
  %v303 = vsel %vm295, %v179, -10000.0
  %v304 = vsel %vm296, %v180, -10000.0
  %v305 = vsel %vm297, %v181, -10000.0
  %v306 = vsel %vm298, %v182, -10000.0
  %v307 = vsel %vm299, %v183, -10000.0
  %v308 = vsel %vm300, %v184, -10000.0
  %v309 = vsel %vm301, %v185, -10000.0
  %v310 = vsel %vm302, %v186, -10000.0
  %v311 = vrot.slane %v303, 4
  %v312 = vmax.f32 %v303, %v311
  %v313 = vrot.slane %v312, 2
  %v314 = vmax.f32 %v312, %v313
  %v315 = vrot.slane %v314, 1
  %v316 = vmax.f32 %v314, %v315
  %v317 = vrot.slane %v304, 4
  %v318 = vmax.f32 %v304, %v317
  %v319 = vrot.slane %v318, 2
  %v320 = vmax.f32 %v318, %v319
  %v321 = vrot.slane %v320, 1
  %v322 = vmax.f32 %v320, %v321
  %v323 = vrot.slane %v305, 4
  %v324 = vmax.f32 %v305, %v323
  %v325 = vrot.slane %v324, 2
  %v326 = vmax.f32 %v324, %v325
  %v327 = vrot.slane %v326, 1
  %v328 = vmax.f32 %v326, %v327
  %v329 = vrot.slane %v306, 4
  %v330 = vmax.f32 %v306, %v329
  %v331 = vrot.slane %v330, 2
  %v332 = vmax.f32 %v330, %v331
  %v333 = vrot.slane %v332, 1
  %v334 = vmax.f32 %v332, %v333
  %v335 = vrot.slane %v307, 4
  %v336 = vmax.f32 %v307, %v335
  %v337 = vrot.slane %v336, 2
  %v338 = vmax.f32 %v336, %v337
  %v339 = vrot.slane %v338, 1
  %v340 = vmax.f32 %v338, %v339
  %v341 = vrot.slane %v308, 4
  %v342 = vmax.f32 %v308, %v341
  %v343 = vrot.slane %v342, 2
  %v344 = vmax.f32 %v342, %v343
  %v345 = vrot.slane %v344, 1
  %v346 = vmax.f32 %v344, %v345
  %v347 = vrot.slane %v309, 4
  %v348 = vmax.f32 %v309, %v347
  %v349 = vrot.slane %v348, 2
  %v350 = vmax.f32 %v348, %v349
  %v351 = vrot.slane %v350, 1
  %v352 = vmax.f32 %v350, %v351
  %v353 = vrot.slane %v310, 4
  %v354 = vmax.f32 %v310, %v353
  %v355 = vrot.slane %v354, 2
  %v356 = vmax.f32 %v354, %v355
  %v357 = vrot.slane %v356, 1
  %v358 = vmax.f32 %v356, %v357
  %vm367 = vcmask 1041409
  %v368 = vsel %vm367, %v322, %v316
  %vm369 = vcmask 1042434
  %v370 = vsel %vm369, %v328, %v368
  %vm371 = vcmask 1043459
  %v372 = vsel %vm371, %v334, %v370
  %vm373 = vcmask 1044484
  %v374 = vsel %vm373, %v340, %v372
  %vm375 = vcmask 1045509
  %v376 = vsel %vm375, %v346, %v374
  %vm377 = vcmask 1046534
  %v378 = vsel %vm377, %v352, %v376
  %vm379 = vcmask 1047559
  %v380 = vsel %vm379, %v358, %v378
  %382 = vst [vmem:[%s4] sm:$0xff] %v380
  // Predicated region
  $region18: #{cnn_forward.1} parent=0 // pred_check
    _
  $region19: #{cnn_forward.1} parent=0 // pred_check_branch
    %384 = sbr.rel (0) target = $region21
  $region20: #{cnn_forward.1} parent=0 // pred_region
    _
  $region21: #{cnn_forward.1} parent=0 // pred_fallthru
    _
  // Predicated region
  $region22: #{cnn_forward.1} parent=0 // pred_check
    _
  $region23: #{cnn_forward.1} parent=0 // pred_check_branch
    %386 = sbr.rel (0) target = $region25
  $region24: #{cnn_forward.1} parent=0 // pred_region
    _
  $region25: #{cnn_forward.1} parent=0 // pred_fallthru
    _

</llo_original>
